<compile_context>
chip_gen: v7x
topology: tpu7x:2x2x1
jax: 0.10.0
libtpu: 0.0.40
codegen_flags: <defaults>
</compile_context>

<pallas_src>
import functools

import jax
import jax.numpy as jnp
from jax.experimental import pallas as pl
from jax.experimental.pallas import tpu as pltpu


_LANE = 128
_SUBLANE = 8
_TILE_BUDGET_BYTES = 2 * 1024 * 1024    # per logits tile (f32, lane-padded)
_MAX_TILE_ROWS = 2048
_VMEM_LIMIT_BYTES = 32 * 1024 * 1024    # explicit; <= physical VMEM on v5e/v6e/v7x


def _round_up(x, m):
    return (x + m - 1) // m * m


def _pick_tile_rows(n, c):
    """Largest multiple-of-8 row tile whose f32 working copy fits the budget."""
    c_pad = _round_up(max(c, 1), _LANE)            # VMEM lane padding
    rows = _TILE_BUDGET_BYTES // (c_pad * 4)       # f32 working copy per tile
    rows = max(_SUBLANE, min(_MAX_TILE_ROWS, rows))
    rows = rows // _SUBLANE * _SUBLANE
    n_pad = _round_up(max(n, 1), _SUBLANE)
    return min(rows, n_pad)


def _gce_kernel(logits_ref, labels_ref, out_ref, *, q: float):
    # (TILE_N, C) block; widen to f32 *after* the DMA (HBM side may be bf16).
    x = logits_ref[...].astype(jnp.float32)
    lab = labels_ref[...]                                      # (TILE_N, 1) int32

    # Numerically stable softmax pieces: two cross-lane (XLU) reductions.
    m = jnp.max(x, axis=1, keepdims=True)                      # (TILE_N, 1)
    s = jnp.sum(jnp.exp(x - m), axis=1, keepdims=True)         # (TILE_N, 1)

    # Gather x[n, labels[n]] with a single one-hot masked reduction.
    # (Out-of-range labels -> x_lab = 0, matching the previous version's
    #  silent behavior; no ignore_index, same as the PyTorch reference usage.)
    col = jax.lax.broadcasted_iota(jnp.int32, x.shape, 1)      # (TILE_N, C)
    x_lab = jnp.sum(jnp.where(col == lab, x, 0.0), axis=1, keepdims=True)

    if q == 0.0:
        # Exact CrossEntropyLoss: -(x[label] - m - log(sum exp(x - m)))
        loss = (m + jnp.log(s)) - x_lab
    else:
        # p = softmax(x)[label] = exp(x_lab - m) / s  (no second full-width
        # select/reduce over exp(x - m)).
        p = jnp.exp(x_lab - m) / s
        p = jnp.clip(p, 1e-7, 1.0)
        loss = (1.0 - jnp.power(p, jnp.float32(q))) / jnp.float32(q)

    out_ref[...] = loss                                        # (TILE_N, 1) f32


def _gce_per_sample(logits, labels, q: float, tile_rows=None):
    n, c = logits.shape
    tile_n = _pick_tile_rows(n, c) if tile_rows is None else int(tile_rows)
    assert tile_n % _SUBLANE == 0 and tile_n > 0

    n_pad = _round_up(n, tile_n)
    labels2d = labels.reshape(n, 1).astype(jnp.int32)
    if n_pad != n:
        logits = jnp.pad(logits, ((0, n_pad - n), (0, 0)))
        labels2d = jnp.pad(labels2d, ((0, n_pad - n), (0, 0)))

    grid = (n_pad // tile_n,)
    out = pl.pallas_call(
        functools.partial(_gce_kernel, q=float(q)),
        out_shape=jax.ShapeDtypeStruct((n_pad, 1), jnp.float32),
        grid=grid,
        in_specs=[
            pl.BlockSpec((tile_n, c), lambda i: (i, 0)),
            pl.BlockSpec((tile_n, 1), lambda i: (i, 0)),
        ],
        out_specs=pl.BlockSpec((tile_n, 1), lambda i: (i, 0)),
        compiler_params=pltpu.CompilerParams(
            dimension_semantics=("parallel",),
            vmem_limit_bytes=_VMEM_LIMIT_BYTES,
        ),
    )(logits, labels2d)
    return out[:n, 0]


class GCE:
    def __init__(self, q=0.7):
        self.q = float(q)

    def __call__(self, logits, labels, reduction="mean"):
        per_sample = _gce_per_sample(logits, labels, self.q)
        if reduction == "mean":
            return jnp.mean(per_sample)
        elif reduction == "none":
            return per_sample
        else:
            raise ValueError("reduction should be mean or none")


class PGCE:
    def __init__(self, t, epoch):
        self.t = t
        if epoch < 1:
            self.lossfn = GCE(0)
        elif 1 <= epoch <= self.t:
            self.lossfn = GCE(epoch / self.t)
        elif epoch > self.t:
            self.lossfn = GCE(1)

    def __call__(self, logits, labels, reduction="mean"):
        return self.lossfn(logits, labels, reduction)


def _ref_gce_per_sample(logits, labels, q):
    """Pure-JAX reference (mirrors the PyTorch module)."""
    x = logits.astype(jnp.float32)
    logp = jax.nn.log_softmax(x, axis=1)
    picked_logp = jnp.take_along_axis(logp, labels[:, None].astype(jnp.int32), axis=1)[:, 0]
    if q == 0.0:
        return -picked_logp
    p = jnp.clip(jnp.exp(picked_logp), 1e-7, 1.0)
    return (1.0 - jnp.power(p, jnp.float32(q))) / jnp.float32(q)


if __name__ == "__main__":
    key = jax.random.PRNGKey(0)
    k_logits, k_labels, k_big = jax.random.split(key, 3)

    # Small shapes consistent with the module: batch=8 samples, 16 classes.
    N, C = 8, 16
    logits = jax.random.normal(k_logits, (N, C), dtype=jnp.float32)
    labels = jax.random.randint(k_labels, (N,), 0, C, dtype=jnp.int32)

    # epoch inside [1, t] -> q = epoch / t (GCE branch)
    pgce = PGCE(t=4, epoch=2)
    loss_mean = pgce(logits, labels, reduction="mean")
    loss_none = pgce(logits, labels, reduction="none")

    # epoch < 1 -> q = 0 -> exact cross-entropy branch
    pgce_ce = PGCE(t=4, epoch=0)
    ce_none = pgce_ce(logits, labels, reduction="none")
    ce_mean = pgce_ce(logits, labels, reduction="mean")

    # bf16 logits stay bf16 in HBM; widening happens inside the kernel.
    logits_bf16 = logits.astype(jnp.bfloat16)
    loss_bf16 = pgce(logits_bf16, labels, reduction="mean")

    # Exercise the multi-tile grid path with a forced small row tile.
    NB, CB = 64, 16
    big_logits = jax.random.normal(k_big, (NB, CB), dtype=jnp.float32)
    big_labels = jax.random.randint(k_labels, (NB,), 0, CB, dtype=jnp.int32)
    tiled = _gce_per_sample(big_logits, big_labels, 0.5, tile_rows=16)

    jax.block_until_ready((loss_mean, loss_none, ce_none, ce_mean, loss_bf16, tiled))

    # Correctness checks against the pure-JAX reference.
    ref_gce = _ref_gce_per_sample(logits, labels, 0.5)
    ref_ce = _ref_gce_per_sample(logits, labels, 0.0)
    ref_tiled = _ref_gce_per_sample(big_logits, big_labels, 0.5)
    assert float(jnp.max(jnp.abs(loss_none - ref_gce))) < 1e-4
    assert float(jnp.max(jnp.abs(ce_none - ref_ce))) < 1e-4
    assert float(jnp.max(jnp.abs(tiled - ref_tiled))) < 1e-4
    assert bool(jnp.isfinite(loss_mean)) and bool(jnp.isfinite(ce_mean))
    assert bool(jnp.isfinite(loss_bf16))

    print("KERNEL_OK")
</pallas_src>

<mosaic_0001>
module attributes {stable_mosaic.version = 11 : i64} {
  func.func @_gce_kernel(%arg0: i32, %arg1: memref<8x16xf32, #tpu.memory_space<vmem>>, %arg2: memref<8x1xi32, #tpu.memory_space<vmem>>, %arg3: memref<8x1xf32, #tpu.memory_space<vmem>>) attributes {dimension_semantics = [#tpu.dimension_semantics<parallel>], iteration_bounds = array<i64: 1>, scalar_prefetch = 0 : i64, scratch_operands = 0 : i64, tpu.core_type = #tpu.core_type<tc>, window_params = [{transform_indices = @transform_0, window_bounds = array<i64: 8, 16>}, {transform_indices = @transform_1, window_bounds = array<i64: 8, 1>}, {transform_indices = @transform_2, window_bounds = array<i64: 8, 1>}]} {
    %c0 = arith.constant 0 : index
    %c0_0 = arith.constant 0 : index
    %0 = vector.load %arg1[%c0, %c0_0] : memref<8x16xf32, #tpu.memory_space<vmem>>, vector<8x16xf32>
    %c0_1 = arith.constant 0 : index
    %c0_2 = arith.constant 0 : index
    %1 = vector.load %arg2[%c0_1, %c0_2] : memref<8x1xi32, #tpu.memory_space<vmem>>, vector<8x1xi32>
    %cst = arith.constant dense<0xFF800000> : vector<8xf32>
    %2 = vector.multi_reduction <maximumf>, %0, %cst [1] : vector<8x16xf32> to vector<8xf32>
    %3 = vector.shape_cast %2 : vector<8xf32> to vector<8x1xf32>
    %4 = vector.broadcast %3 : vector<8x1xf32> to vector<8x16xf32>
    %5 = arith.subf %0, %4 : vector<8x16xf32>
    %6 = math.exp %5 : vector<8x16xf32>
    %cst_3 = arith.constant dense<0.000000e+00> : vector<8xf32>
    %7 = vector.multi_reduction <add>, %6, %cst_3 [1] : vector<8x16xf32> to vector<8xf32>
    %8 = vector.shape_cast %7 : vector<8xf32> to vector<8x1xf32>
    %9 = tpu.iota {dimensions = array<i32: 1>} : vector<8x16xi32>
    %10 = vector.broadcast %1 : vector<8x1xi32> to vector<8x16xi32>
    %11 = arith.cmpi eq, %9, %10 : vector<8x16xi32>
    %cst_4 = arith.constant 0.000000e+00 : f32
    %12 = vector.broadcast %cst_4 : f32 to vector<8x16xf32>
    %13 = arith.select %11, %0, %12 : vector<8x16xi1>, vector<8x16xf32>
    %cst_5 = arith.constant dense<0.000000e+00> : vector<8xf32>
    %14 = vector.multi_reduction <add>, %13, %cst_5 [1] : vector<8x16xf32> to vector<8xf32>
    %15 = vector.shape_cast %14 : vector<8xf32> to vector<8x1xf32>
    %16 = arith.subf %15, %3 : vector<8x1xf32>
    %17 = math.exp %16 : vector<8x1xf32>
    %18 = arith.divf %17, %8 : vector<8x1xf32>
    %cst_6 = arith.constant 1.000000e-07 : f32
    %cst_7 = arith.constant 1.000000e+00 : f32
    %19 = vector.broadcast %cst_6 : f32 to vector<8x1xf32>
    %20 = arith.maximumf %19, %18 : vector<8x1xf32>
    %21 = vector.broadcast %cst_7 : f32 to vector<8x1xf32>
    %22 = arith.minimumf %21, %20 : vector<8x1xf32>
    %cst_8 = arith.constant 5.000000e-01 : f32
    %23 = vector.broadcast %cst_8 : f32 to vector<8x1xf32>
    %24 = math.powf %22, %23 : vector<8x1xf32>
    %cst_9 = arith.constant 1.000000e+00 : f32
    %25 = vector.broadcast %cst_9 : f32 to vector<8x1xf32>
    %26 = arith.subf %25, %24 : vector<8x1xf32>
    %cst_10 = arith.constant 5.000000e-01 : f32
    %27 = vector.broadcast %cst_10 : f32 to vector<8x1xf32>
    %28 = arith.divf %26, %27 : vector<8x1xf32>
    %c0_11 = arith.constant 0 : index
    %c0_12 = arith.constant 0 : index
    %29 = vector.load %arg3[%c0_11, %c0_12] : memref<8x1xf32, #tpu.memory_space<vmem>>, vector<8x1xf32>
    tpu.vector_store %arg3[%c0_11, %c0_12], %28 {strides = array<i32>} : memref<8x1xf32, #tpu.memory_space<vmem>>, vector<8x1xf32>,
    return
  }
  func.func @transform_0(%arg0: i32) -> (i32, i32) {
    %c0_i32 = arith.constant 0 : i32
    %c0_i32_0 = arith.constant 0 : i32
    return %arg0, %c0_i32 : i32, i32
  }
  func.func @transform_1(%arg0: i32) -> (i32, i32) {
    %c0_i32 = arith.constant 0 : i32
    %c0_i32_0 = arith.constant 0 : i32
    return %arg0, %c0_i32 : i32, i32
  }
  func.func @transform_2(%arg0: i32) -> (i32, i32) {
    %c0_i32 = arith.constant 0 : i32
    %c0_i32_0 = arith.constant 0 : i32
    return %arg0, %c0_i32 : i32, i32
  }
}

</mosaic_0001>

<llo_original>
// kernel: tpu_custom_call.1
$region0: #{tpu_custom_call.1}
  #allocation0 [shape = 'u32[]', space=smem, size = 0x4, offset = 0x4, fixed_abs, tag = 'smem constant byte address 0x4 - core index']
  #allocation1 [shape = 'u32[144,128]{1,0:T(1,128)}', space=vmem, size = 0x12000, scoped, tag = 'internal scratch']
  %s0 = inlined_call_operand.vmem [shape: f32[8,16], index: 0, kind: input, shape index: {}]
  %s1 = inlined_call_operand.vmem [shape: s32[8,1], index: 1, kind: input, shape index: {}]
  %s2 = inlined_call_operand.vmem [shape: f32[8,1], index: 2, kind: output, shape index: {}]
  %s3 = sld [smem:[#allocation0]]
  $region18: #{tpu_custom_call.1} parent=0
    _
  %s5 = ssub.s32 1, %s3
  %s6 = scalar_select 0, %s5, %s3
  // Predicated region
  $region2: #{tpu_custom_call.1} parent=0 // pred_check
    _
  $region3: #{tpu_custom_call.1} parent=0 // pred_check_branch
    %8 = sbr.rel (0) target = $region5
  $region4: #{tpu_custom_call.1} parent=0 // pred_region
    _
  $region5: #{tpu_custom_call.1} parent=0 // pred_fallthru
    _
  // Predicated region
  $region6: #{tpu_custom_call.1} parent=0 // pred_check
    _
  $region7: #{tpu_custom_call.1} parent=0 // pred_check_branch
    %10 = sbr.rel (0) target = $region9
  $region8: #{tpu_custom_call.1} parent=0 // pred_region
    _
  $region9: #{tpu_custom_call.1} parent=0 // pred_fallthru
    _
  %v11 = vld [vmem:[%s0] sm:$0xff]
  %v12 = vld [vmem:[%s1] sm:$0xff]
  %vm13 = vcmask 130048
  %v14 = vsel %vm13, %v11, -inf
  %15 = vmax.xlane.f32.xlu0 %v14
  %v16 = vpop.xlane.xlu0 %15
  %v17 = vsub.f32 %v11, %v16
  %v18 = vmul.f32 %v17, 1.442695
  %v19 = vpow.pop %v18
  %v20 = vsel %vm13, %v19, 0.0
  %21 = vadd.xlane.f32.xlu0 %v20
  %v22 = vpop.xlane.xlu0 %21
  %v23 = vlaneseq
  %v24 = vand.u32 %v23, 127
  %25 = vset.pattern.permute.xlu0 0
  %26 = vperm.xlu0 %25, %v12
  %v27 = vpop.permute.xlu0 %26
  %vm28 = vcmp.eq.s32.totalorder %v24, %v27
  %v29 = vsel %vm28, %v11, 0.0
  %v30 = vsel %vm13, %v29, 0.0
  %31 = vadd.xlane.f32.xlu0 %v30
  %v32 = vpop.xlane.xlu0 %31
  %v33 = vsub.f32 %v32, %v16
  %v34 = vmul.f32 %v33, 1.442695
  %v35 = vpow.pop %v34
  %v36 = vrcp.pop %v22
  %v37 = vmul.f32 %v35, %v36
  %v38 = vmax.f32 %v37, 1e-07
  %v39 = vmin.f32 %v38, 1.0
  %v40 = vpow.f32 %v39, 0.5
  %v41 = vsub.f32 1.0, %v40
  %v42 = vrcp.pop 0.5
  %v43 = vmul.f32 %v41, %v42
  %vm44 = vcmask 7168
  %45 = vst.msk [vmem:[%s2] sm:$0xff] %vm44, %v43
  // Predicated region
  $region10: #{tpu_custom_call.1} parent=0 // pred_check
    _
  $region11: #{tpu_custom_call.1} parent=0 // pred_check_branch
    %47 = sbr.rel (0) target = $region13
  $region12: #{tpu_custom_call.1} parent=0 // pred_region
    _
  $region13: #{tpu_custom_call.1} parent=0 // pred_fallthru
    _
  // Predicated region
  $region14: #{tpu_custom_call.1} parent=0 // pred_check
    _
  $region15: #{tpu_custom_call.1} parent=0 // pred_check_branch
    %49 = sbr.rel (0) target = $region17
  $region16: #{tpu_custom_call.1} parent=0 // pred_region
    _
  $region17: #{tpu_custom_call.1} parent=0 // pred_fallthru
    _

</llo_original>
